<compile_context>
chip_gen: v7x
topology: tpu7x:2x2x1
jax: 0.10.0
libtpu: 0.0.40
codegen_flags: <defaults>
</compile_context>

<pallas_src>
import functools

import jax
import jax.numpy as jnp
from jax.experimental import pallas as pl
from jax.experimental.pallas import tpu as pltpu

_LANE = 128
_SUBLANE = 8


def _ru(x, m):
    return (x + m - 1) // m * m


def _pad2(a, rows, cols):
    out = jnp.zeros((rows, cols), a.dtype)
    return out.at[: a.shape[0], : a.shape[1]].set(a)


def _bf16_transcendentals_ok():
    """bf16 EUP/VPU exists on v6e and newer; keep f32 sigmoid on v5e/older."""
    try:
        kind = jax.devices()[0].device_kind.lower()
    except Exception:  # pragma: no cover - CPU / interpret fallback
        return True
    return not any(tag in kind for tag in ("v2", "v3", "v4", "v5"))


def _pick_tb(batch):
    """Batch tile: multiple of 8, up to 256; prefer grid >= 2 for large B."""
    if batch <= _SUBLANE:
        return _ru(batch, _SUBLANE)
    return min(256, _ru((batch + 1) // 2, _SUBLANE))


# -----------------------------------------------------------------------------
# Kernel
# -----------------------------------------------------------------------------
def _vae_kernel(x_ref, eps_ref,
                ew1_ref, eb1_ref, ew23_ref, eb23_ref,
                dw1_ref, db1_ref, dw2_ref, db2_ref,
                out_ref, kl_ref,
                *, tb, lp, b_actual, mask_rows, sigmoid_bf16):
    # ---- Encoder ----
    x = x_ref[...].astype(jnp.bfloat16)                    # (TB, Dp)

    h1 = jnp.dot(x, ew1_ref[...],
                 preferred_element_type=jnp.float32) + eb1_ref[...]
    h1 = jnp.maximum(h1, 0.0)                               # (TB, Hdp) f32

    # Fused mu / log_sigma projection: one (TB, 2*Lp) MXU push, then slice.
    mu_ls = jnp.dot(h1.astype(jnp.bfloat16), ew23_ref[...],
                    preferred_element_type=jnp.float32) + eb23_ref[...]
    mu = mu_ls[:, :lp]                                      # (TB, Lp)
    log_s = mu_ls[:, lp:]                                   # (TB, Lp)
    sigma = jnp.exp(log_s)

    z = mu + sigma * eps_ref[...]                           # reparameterization

    # ---- KL partial for this batch block ----
    # Padded latent columns contribute exactly +0.5 per valid row (mu=0,
    # sigma=1, log_s=0); that constant is subtracted once in the wrapper, so
    # no column mask is needed here.  The row mask is only emitted when the
    # batch is actually padded (only the last block can be partial).
    kl_elem = sigma * sigma + mu * mu - log_s - 0.5
    if mask_rows:
        i = pl.program_id(0)
        valid_rows = b_actual - i * tb                      # >= 1 by construction
        row = jax.lax.broadcasted_iota(jnp.int32, kl_elem.shape, 0)
        kl_elem = jnp.where(row < valid_rows, kl_elem, 0.0)
    kl_ref[0, 0] = jnp.sum(kl_elem)

    # ---- Decoder ----
    d1 = jnp.dot(z.astype(jnp.bfloat16), dw1_ref[...],
                 preferred_element_type=jnp.float32) + db1_ref[...]
    d1 = jnp.maximum(d1, 0.0)                               # (TB, Hdp) f32

    logits = jnp.dot(d1.astype(jnp.bfloat16), dw2_ref[...],
                     preferred_element_type=jnp.float32) + db2_ref[...]
    if sigmoid_bf16:
        recon = jax.nn.sigmoid(logits.astype(jnp.bfloat16))
    else:
        recon = jax.nn.sigmoid(logits)
    out_ref[...] = recon.astype(out_ref.dtype)


# -----------------------------------------------------------------------------
# One-time parameter preparation (hoisted out of the per-call path)
# -----------------------------------------------------------------------------
def prepare_params(params):
    """Pad weights to lane-dense shapes, fuse mu/log_sigma proj, cast to bf16."""
    D, Hd = params["enc_w1"].shape
    L = params["enc_w2"].shape[1]
    Dp, Hdp, Lp = _ru(D, _LANE), _ru(Hd, _LANE), _ru(L, _LANE)
    bf16 = jnp.bfloat16

    prepared = dict(
        ew1=_pad2(params["enc_w1"], Dp, Hdp).astype(bf16),
        eb1=_pad2(params["enc_b1"], 1, Hdp),
        ew23=jnp.concatenate(
            [_pad2(params["enc_w2"], Hdp, Lp), _pad2(params["enc_w3"], Hdp, Lp)],
            axis=1).astype(bf16),
        eb23=jnp.concatenate(
            [_pad2(params["enc_b2"], 1, Lp), _pad2(params["enc_b3"], 1, Lp)],
            axis=1),
        dw1=_pad2(params["dec_w1"], Lp, Hdp).astype(bf16),
        db1=_pad2(params["dec_b1"], 1, Hdp),
        dw2=_pad2(params["dec_w2"], Hdp, Dp).astype(bf16),
        db2=_pad2(params["dec_b2"], 1, Dp),
    )
    dims = dict(D=D, Hd=Hd, L=L, Dp=Dp, Hdp=Hdp, Lp=Lp)
    return prepared, dims


# -----------------------------------------------------------------------------
# Forward pass
# -----------------------------------------------------------------------------
def vae_forward(x_nchw, eps, prepared, dims, h, w):
    """x_nchw: (B, C, H, W) f32. Returns (recon (-1, 1, h, w) f32, kl scalar)."""
    B = x_nchw.shape[0]
    x_flat = x_nchw.reshape(B, -1)                          # torch.flatten(x, 1)
    D, L = dims["D"], dims["L"]
    Dp, Hdp, Lp = dims["Dp"], dims["Hdp"], dims["Lp"]
    assert x_flat.shape[1] == D

    TB = _pick_tb(B)
    G = -(-B // TB)
    Bp = G * TB

    # Only pad the activations when genuinely required.  The f32->bf16 cast of
    # x happens inside the kernel, so the unpadded fast path has no extra
    # wrapper-side HBM pass.
    if (B, D) != (Bp, Dp):
        x_in = _pad2(x_flat, Bp, Dp).astype(jnp.bfloat16)
    else:
        x_in = x_flat
    if (B, L) != (Bp, Lp):
        eps_in = _pad2(eps, Bp, Lp)
    else:
        eps_in = eps

    batch_spec = lambda i: (i, 0)      # noqa: E731
    resident = lambda i: (0, 0)        # noqa: E731  (weights stay in VMEM)

    in_specs = [
        pl.BlockSpec((TB, Dp), batch_spec),     # x
        pl.BlockSpec((TB, Lp), batch_spec),     # eps
        pl.BlockSpec((Dp, Hdp), resident),      # enc_w1
        pl.BlockSpec((1, Hdp), resident),       # enc_b1
        pl.BlockSpec((Hdp, 2 * Lp), resident),  # enc_w2|w3 fused
        pl.BlockSpec((1, 2 * Lp), resident),    # enc_b2|b3 fused
        pl.BlockSpec((Lp, Hdp), resident),      # dec_w1
        pl.BlockSpec((1, Hdp), resident),       # dec_b1
        pl.BlockSpec((Hdp, Dp), resident),      # dec_w2
        pl.BlockSpec((1, Dp), resident),        # dec_b2
    ]

    kernel = functools.partial(
        _vae_kernel, tb=TB, lp=Lp, b_actual=B,
        mask_rows=(Bp != B), sigmoid_bf16=_bf16_transcendentals_ok())

    recon_p, kl_parts = pl.pallas_call(
        kernel,
        grid=(G,),
        in_specs=in_specs,
        out_specs=(
            pl.BlockSpec((TB, Dp), batch_spec),
            pl.BlockSpec((1, 1), batch_spec,
                         memory_space=pltpu.MemorySpace.SMEM),
        ),
        out_shape=(
            jax.ShapeDtypeStruct((Bp, Dp), jnp.float32),
            jax.ShapeDtypeStruct((G, 1), jnp.float32),
        ),
        compiler_params=pltpu.CompilerParams(
            dimension_semantics=("parallel",),
            # Explicit scoped-VMEM limit: well above this kernel's footprint,
            # within physical budget on all of v5e/v6e/v7x.
            vmem_limit_bytes=64 * 1024 * 1024),
    )(x_in, eps_in,
      prepared["ew1"], prepared["eb1"], prepared["ew23"], prepared["eb23"],
      prepared["dw1"], prepared["db1"], prepared["dw2"], prepared["db2"])

    # Crop only the axes that were actually padded.
    if Bp != B:
        recon_p = recon_p[:B]
    if Dp != D:
        recon_p = recon_p[:, :D]
    recon = recon_p.reshape(-1, 1, h, w)

    # Static correction for the zero-padded latent columns (+0.5 each per
    # valid batch row).
    kl = jnp.sum(kl_parts) - 0.5 * (Lp - L) * B
    return recon, kl


# -----------------------------------------------------------------------------
# Parameter init + pure-JAX reference (for correctness check)
# -----------------------------------------------------------------------------
def init_params(key, input_dims, hidden_dims, latent_dims):
    """Deterministic synthetic init (uniform, PyTorch Linear default scale)."""
    ks = jax.random.split(key, 10)

    def lin(kw, kb, fan_in, fan_out):
        bound = 1.0 / jnp.sqrt(fan_in)
        w = jax.random.uniform(kw, (fan_in, fan_out), jnp.float32, -bound, bound)
        b = jax.random.uniform(kb, (1, fan_out), jnp.float32, -bound, bound)
        return w, b

    ew1, eb1 = lin(ks[0], ks[1], input_dims, hidden_dims)
    ew2, eb2 = lin(ks[2], ks[3], hidden_dims, latent_dims)
    ew3, eb3 = lin(ks[4], ks[5], hidden_dims, latent_dims)
    dw1, db1 = lin(ks[6], ks[7], latent_dims, hidden_dims)
    dw2, db2 = lin(ks[8], ks[9], hidden_dims, input_dims)
    return dict(enc_w1=ew1, enc_b1=eb1, enc_w2=ew2, enc_b2=eb2,
                enc_w3=ew3, enc_b3=eb3, dec_w1=dw1, dec_b1=db1,
                dec_w2=dw2, dec_b2=db2)


def vae_reference(x_nchw, eps, params, h, w):
    x = x_nchw.reshape(x_nchw.shape[0], -1)
    h1 = jnp.maximum(x @ params["enc_w1"] + params["enc_b1"], 0.0)
    mu = h1 @ params["enc_w2"] + params["enc_b2"]
    log_s = h1 @ params["enc_w3"] + params["enc_b3"]
    sigma = jnp.exp(log_s)
    z = mu + sigma * eps
    kl = jnp.sum(sigma ** 2 + mu ** 2 - log_s - 0.5)
    d1 = jnp.maximum(z @ params["dec_w1"] + params["dec_b1"], 0.0)
    recon = jax.nn.sigmoid(d1 @ params["dec_w2"] + params["dec_b2"])
    return recon.reshape(-1, 1, h, w), kl


if __name__ == "__main__":
    # Small shapes consistent with the module: single-channel image, since the
    # decoder reshapes to (-1, 1, h, w).
    B, C, H, W = 2, 1, 16, 16
    input_dims = C * H * W          # 256
    hidden_dims = 32
    latent_dims = 8

    key = jax.random.PRNGKey(0)
    k_x, k_eps, k_p = jax.random.split(key, 3)

    x = jax.random.normal(k_x, (B, C, H, W), jnp.float32)
    # TODO(synk): torch.distributions.Normal sampling inside the encoder is
    # replaced by an explicit eps ~ N(0,1) input (kept host-side for exact
    # parity with the pure-JAX reference; pltpu.stateful_normal could generate
    # it in-kernel instead).
    eps = jax.random.normal(k_eps, (B, latent_dims), jnp.float32)
    params = init_params(k_p, input_dims, hidden_dims, latent_dims)

    prepared, dims = prepare_params(params)   # one-time (hoisted out of forward)

    recon, kl = vae_forward(x, eps, prepared, dims, H, W)
    jax.block_until_ready((recon, kl))

    recon_ref, kl_ref = vae_reference(x, eps, params, H, W)

    assert recon.shape == (B, 1, H, W)
    assert recon.dtype == jnp.float32
    assert bool(jnp.all(recon >= 0.0) & jnp.all(recon <= 1.0))
    assert bool(jnp.isfinite(kl))
    assert bool(jnp.allclose(recon, recon_ref, atol=5e-2, rtol=5e-2))
    assert abs(float(kl) - float(kl_ref)) <= 0.1 * max(1.0, abs(float(kl_ref)))
    print("KERNEL_OK")
</pallas_src>

<mosaic_0001>
module attributes {stable_mosaic.version = 11 : i64} {
  func.func @_vae_kernel(%arg0: i32, %arg1: memref<8x256xbf16, #tpu.memory_space<vmem>>, %arg2: memref<8x128xf32, #tpu.memory_space<vmem>>, %arg3: memref<256x128xbf16, #tpu.memory_space<vmem>>, %arg4: memref<1x128xf32, #tpu.memory_space<vmem>>, %arg5: memref<128x256xbf16, #tpu.memory_space<vmem>>, %arg6: memref<1x256xf32, #tpu.memory_space<vmem>>, %arg7: memref<128x128xbf16, #tpu.memory_space<vmem>>, %arg8: memref<1x128xf32, #tpu.memory_space<vmem>>, %arg9: memref<128x256xbf16, #tpu.memory_space<vmem>>, %arg10: memref<1x256xf32, #tpu.memory_space<vmem>>, %arg11: memref<8x256xf32, #tpu.memory_space<vmem>>, %arg12: memref<1x1xf32, #tpu.memory_space<smem>>) attributes {dimension_semantics = [#tpu.dimension_semantics<parallel>], iteration_bounds = array<i64: 1>, scalar_prefetch = 0 : i64, scratch_operands = 0 : i64, tpu.core_type = #tpu.core_type<tc>, window_params = [{transform_indices = @transform_0, window_bounds = array<i64: 8, 256>}, {transform_indices = @transform_1, window_bounds = array<i64: 8, 128>}, {pipeline_mode = #tpu.pipeline_mode<synchronous>, transform_indices = @transform_2, window_bounds = array<i64: 256, 128>}, {pipeline_mode = #tpu.pipeline_mode<synchronous>, transform_indices = @transform_3, window_bounds = array<i64: 1, 128>}, {pipeline_mode = #tpu.pipeline_mode<synchronous>, transform_indices = @transform_4, window_bounds = array<i64: 128, 256>}, {pipeline_mode = #tpu.pipeline_mode<synchronous>, transform_indices = @transform_5, window_bounds = array<i64: 1, 256>}, {pipeline_mode = #tpu.pipeline_mode<synchronous>, transform_indices = @transform_6, window_bounds = array<i64: 128, 128>}, {pipeline_mode = #tpu.pipeline_mode<synchronous>, transform_indices = @transform_7, window_bounds = array<i64: 1, 128>}, {pipeline_mode = #tpu.pipeline_mode<synchronous>, transform_indices = @transform_8, window_bounds = array<i64: 128, 256>}, {pipeline_mode = #tpu.pipeline_mode<synchronous>, transform_indices = @transform_9, window_bounds = array<i64: 1, 256>}, {transform_indices = @transform_10, window_bounds = array<i64: 8, 256>}, {transform_indices = @transform_11, window_bounds = array<i64: 1, 1>}]} {
    %c0 = arith.constant 0 : index
    %c0_0 = arith.constant 0 : index
    %0 = vector.load %arg1[%c0, %c0_0] : memref<8x256xbf16, #tpu.memory_space<vmem>>, vector<8x256xbf16>
    %c0_1 = arith.constant 0 : index
    %c0_2 = arith.constant 0 : index
    %1 = vector.load %arg3[%c0_1, %c0_2] : memref<256x128xbf16, #tpu.memory_space<vmem>>, vector<256x128xbf16>
    %cst = arith.constant dense<0.000000e+00> : vector<8x128xf32>
    %2 = tpu.matmul %0, %1, %cst {dimension_numbers = #tpu.dot_dimension_numbers<[1], [0], [0], [1], [0, 0, 1, 1], [], []>} : vector<8x256xbf16>, vector<256x128xbf16>, vector<8x128xf32> -> vector<8x128xf32>
    %c0_3 = arith.constant 0 : index
    %c0_4 = arith.constant 0 : index
    %3 = vector.load %arg4[%c0_3, %c0_4] : memref<1x128xf32, #tpu.memory_space<vmem>>, vector<1x128xf32>
    %4 = vector.broadcast %3 : vector<1x128xf32> to vector<8x128xf32>
    %5 = arith.addf %2, %4 : vector<8x128xf32>
    %cst_5 = arith.constant 0.000000e+00 : f32
    %6 = vector.broadcast %cst_5 : f32 to vector<8x128xf32>
    %7 = arith.maximumf %5, %6 : vector<8x128xf32>
    %8 = arith.truncf %7 : vector<8x128xf32> to vector<8x128xbf16>
    %c0_6 = arith.constant 0 : index
    %c0_7 = arith.constant 0 : index
    %9 = vector.load %arg5[%c0_6, %c0_7] : memref<128x256xbf16, #tpu.memory_space<vmem>>, vector<128x256xbf16>
    %cst_8 = arith.constant dense<0.000000e+00> : vector<8x256xf32>
    %10 = tpu.matmul %8, %9, %cst_8 {dimension_numbers = #tpu.dot_dimension_numbers<[1], [0], [0], [1], [0, 0, 1, 1], [], []>} : vector<8x128xbf16>, vector<128x256xbf16>, vector<8x256xf32> -> vector<8x256xf32>
    %c0_9 = arith.constant 0 : index
    %c0_10 = arith.constant 0 : index
    %11 = vector.load %arg6[%c0_9, %c0_10] : memref<1x256xf32, #tpu.memory_space<vmem>>, vector<1x256xf32>
    %12 = vector.broadcast %11 : vector<1x256xf32> to vector<8x256xf32>
    %13 = arith.addf %10, %12 : vector<8x256xf32>
    %14 = vector.extract_strided_slice %13 {offsets = [0, 0], sizes = [8, 128], strides = [1, 1]} : vector<8x256xf32> to vector<8x128xf32>
    %15 = vector.extract_strided_slice %13 {offsets = [0, 128], sizes = [8, 128], strides = [1, 1]} : vector<8x256xf32> to vector<8x128xf32>
    %16 = math.exp %15 : vector<8x128xf32>
    %c0_11 = arith.constant 0 : index
    %c0_12 = arith.constant 0 : index
    %17 = vector.load %arg2[%c0_11, %c0_12] : memref<8x128xf32, #tpu.memory_space<vmem>>, vector<8x128xf32>
    %18 = arith.mulf %16, %17 : vector<8x128xf32>
    %19 = arith.addf %14, %18 : vector<8x128xf32>
    %20 = arith.mulf %16, %16 : vector<8x128xf32>
    %21 = arith.mulf %14, %14 : vector<8x128xf32>
    %22 = arith.addf %20, %21 : vector<8x128xf32>
    %23 = arith.subf %22, %15 : vector<8x128xf32>
    %cst_13 = arith.constant 5.000000e-01 : f32
    %24 = vector.broadcast %cst_13 : f32 to vector<8x128xf32>
    %25 = arith.subf %23, %24 : vector<8x128xf32>
    %c8_i32 = arith.constant 8 : i32
    %26 = arith.muli %arg0, %c8_i32 : i32
    %c2_i32 = arith.constant 2 : i32
    %27 = arith.subi %c2_i32, %26 : i32
    %28 = tpu.iota {dimensions = array<i32: 0>} : vector<8x128xi32>
    %29 = vector.broadcast %27 : i32 to vector<8x128xi32>
    %30 = arith.cmpi slt, %28, %29 : vector<8x128xi32>
    %cst_14 = arith.constant 0.000000e+00 : f32
    %31 = vector.broadcast %cst_14 : f32 to vector<8x128xf32>
    %32 = arith.select %30, %25, %31 : vector<8x128xi1>, vector<8x128xf32>
    %33 = vector.shape_cast %32 : vector<8x128xf32> to vector<1x8x128xf32>
    %cst_15 = arith.constant dense<0.000000e+00> : vector<1xf32>
    %34 = vector.multi_reduction <add>, %33, %cst_15 [1, 2] : vector<1x8x128xf32> to vector<1xf32>
    %35 = vector.shape_cast %34 : vector<1xf32> to vector<1x1x1xf32>
    %36 = vector.extract %35[0, 0, 0] : f32 from vector<1x1x1xf32>
    %c0_16 = arith.constant 0 : index
    %c0_17 = arith.constant 0 : index
    %37 = memref.load %arg12[%c0_16, %c0_17] : memref<1x1xf32, #tpu.memory_space<smem>>
    memref.store %36, %arg12[%c0_16, %c0_17] : memref<1x1xf32, #tpu.memory_space<smem>>
    %38 = arith.truncf %19 : vector<8x128xf32> to vector<8x128xbf16>
    %c0_18 = arith.constant 0 : index
    %c0_19 = arith.constant 0 : index
    %39 = vector.load %arg7[%c0_18, %c0_19] : memref<128x128xbf16, #tpu.memory_space<vmem>>, vector<128x128xbf16>
    %cst_20 = arith.constant dense<0.000000e+00> : vector<8x128xf32>
    %40 = tpu.matmul %38, %39, %cst_20 {dimension_numbers = #tpu.dot_dimension_numbers<[1], [0], [0], [1], [0, 0, 1, 1], [], []>} : vector<8x128xbf16>, vector<128x128xbf16>, vector<8x128xf32> -> vector<8x128xf32>
    %c0_21 = arith.constant 0 : index
    %c0_22 = arith.constant 0 : index
    %41 = vector.load %arg8[%c0_21, %c0_22] : memref<1x128xf32, #tpu.memory_space<vmem>>, vector<1x128xf32>
    %42 = vector.broadcast %41 : vector<1x128xf32> to vector<8x128xf32>
    %43 = arith.addf %40, %42 : vector<8x128xf32>
    %cst_23 = arith.constant 0.000000e+00 : f32
    %44 = vector.broadcast %cst_23 : f32 to vector<8x128xf32>
    %45 = arith.maximumf %43, %44 : vector<8x128xf32>
    %46 = arith.truncf %45 : vector<8x128xf32> to vector<8x128xbf16>
    %c0_24 = arith.constant 0 : index
    %c0_25 = arith.constant 0 : index
    %47 = vector.load %arg9[%c0_24, %c0_25] : memref<128x256xbf16, #tpu.memory_space<vmem>>, vector<128x256xbf16>
    %cst_26 = arith.constant dense<0.000000e+00> : vector<8x256xf32>
    %48 = tpu.matmul %46, %47, %cst_26 {dimension_numbers = #tpu.dot_dimension_numbers<[1], [0], [0], [1], [0, 0, 1, 1], [], []>} : vector<8x128xbf16>, vector<128x256xbf16>, vector<8x256xf32> -> vector<8x256xf32>
    %c0_27 = arith.constant 0 : index
    %c0_28 = arith.constant 0 : index
    %49 = vector.load %arg10[%c0_27, %c0_28] : memref<1x256xf32, #tpu.memory_space<vmem>>, vector<1x256xf32>
    %50 = vector.broadcast %49 : vector<1x256xf32> to vector<8x256xf32>
    %51 = arith.addf %48, %50 : vector<8x256xf32>
    %52 = arith.truncf %51 : vector<8x256xf32> to vector<8x256xbf16>
    %53 = arith.negf %52 : vector<8x256xbf16>
    %54 = math.exp %53 : vector<8x256xbf16>
    %cst_29 = arith.constant 1.000000e+00 : bf16
    %55 = vector.broadcast %cst_29 : bf16 to vector<8x256xbf16>
    %56 = arith.addf %55, %54 : vector<8x256xbf16>
    %57 = arith.divf %55, %56 : vector<8x256xbf16>
    %58 = arith.extf %57 : vector<8x256xbf16> to vector<8x256xf32>
    %c0_30 = arith.constant 0 : index
    %c0_31 = arith.constant 0 : index
    %59 = vector.load %arg11[%c0_30, %c0_31] : memref<8x256xf32, #tpu.memory_space<vmem>>, vector<8x256xf32>
    tpu.vector_store %arg11[%c0_30, %c0_31], %58 {strides = array<i32>} : memref<8x256xf32, #tpu.memory_space<vmem>>, vector<8x256xf32>,
    return
  }
  func.func @transform_0(%arg0: i32) -> (i32, i32) {
    %c0_i32 = arith.constant 0 : i32
    %c0_i32_0 = arith.constant 0 : i32
    return %arg0, %c0_i32 : i32, i32
  }
  func.func @transform_1(%arg0: i32) -> (i32, i32) {
    %c0_i32 = arith.constant 0 : i32
    %c0_i32_0 = arith.constant 0 : i32
    return %arg0, %c0_i32 : i32, i32
  }
  func.func @transform_2(%arg0: i32) -> (i32, i32) {
    %c0_i32 = arith.constant 0 : i32
    %c0_i32_0 = arith.constant 0 : i32
    %c0_i32_1 = arith.constant 0 : i32
    return %c0_i32, %c0_i32_0 : i32, i32
  }
  func.func @transform_3(%arg0: i32) -> (i32, i32) {
    %c0_i32 = arith.constant 0 : i32
    %c0_i32_0 = arith.constant 0 : i32
    %c0_i32_1 = arith.constant 0 : i32
    return %c0_i32, %c0_i32_0 : i32, i32
  }
  func.func @transform_4(%arg0: i32) -> (i32, i32) {
    %c0_i32 = arith.constant 0 : i32
    %c0_i32_0 = arith.constant 0 : i32
    %c0_i32_1 = arith.constant 0 : i32
    return %c0_i32, %c0_i32_0 : i32, i32
  }
  func.func @transform_5(%arg0: i32) -> (i32, i32) {
    %c0_i32 = arith.constant 0 : i32
    %c0_i32_0 = arith.constant 0 : i32
    %c0_i32_1 = arith.constant 0 : i32
    return %c0_i32, %c0_i32_0 : i32, i32
  }
  func.func @transform_6(%arg0: i32) -> (i32, i32) {
    %c0_i32 = arith.constant 0 : i32
    %c0_i32_0 = arith.constant 0 : i32
    %c0_i32_1 = arith.constant 0 : i32
    return %c0_i32, %c0_i32_0 : i32, i32
  }
  func.func @transform_7(%arg0: i32) -> (i32, i32) {
    %c0_i32 = arith.constant 0 : i32
    %c0_i32_0 = arith.constant 0 : i32
    %c0_i32_1 = arith.constant 0 : i32
    return %c0_i32, %c0_i32_0 : i32, i32
  }
  func.func @transform_8(%arg0: i32) -> (i32, i32) {
    %c0_i32 = arith.constant 0 : i32
    %c0_i32_0 = arith.constant 0 : i32
    %c0_i32_1 = arith.constant 0 : i32
    return %c0_i32, %c0_i32_0 : i32, i32
  }
  func.func @transform_9(%arg0: i32) -> (i32, i32) {
    %c0_i32 = arith.constant 0 : i32
    %c0_i32_0 = arith.constant 0 : i32
    %c0_i32_1 = arith.constant 0 : i32
    return %c0_i32, %c0_i32_0 : i32, i32
  }
  func.func @transform_10(%arg0: i32) -> (i32, i32) {
    %c0_i32 = arith.constant 0 : i32
    %c0_i32_0 = arith.constant 0 : i32
    return %arg0, %c0_i32 : i32, i32
  }
  func.func @transform_11(%arg0: i32) -> (i32, i32) {
    %c0_i32 = arith.constant 0 : i32
    %c0_i32_0 = arith.constant 0 : i32
    return %arg0, %c0_i32 : i32, i32
  }
}

</mosaic_0001>

<llo_original>
// kernel: tpu_custom_call.1
$region0: #{tpu_custom_call.1}
  #allocation0 [shape = 'u32[]', space=smem, size = 0x4, offset = 0x4, fixed_abs, tag = 'smem constant byte address 0x4 - core index']
  #allocation1 [shape = 'u32[144,128]{1,0:T(1,128)}', space=vmem, size = 0x12000, scoped, tag = 'internal scratch']
  %s0 = inlined_call_operand.hbm [shape: bf16[8,256], index: 0, kind: input, shape index: {}]
  %s1 = inlined_call_operand.hbm [shape: f32[8,128], index: 1, kind: input, shape index: {}]
  %s2 = inlined_call_operand.hbm [shape: bf16[256,128], index: 2, kind: input, shape index: {}]
  %s3 = inlined_call_operand.hbm [shape: f32[1,128], index: 3, kind: input, shape index: {}]
  %s4 = inlined_call_operand.hbm [shape: bf16[128,256], index: 4, kind: input, shape index: {}]
  %s5 = inlined_call_operand.hbm [shape: f32[1,256], index: 5, kind: input, shape index: {}]
  %s6 = inlined_call_operand.hbm [shape: bf16[128,128], index: 6, kind: input, shape index: {}]
  %s7 = inlined_call_operand.hbm [shape: f32[1,128], index: 7, kind: input, shape index: {}]
  %s8 = inlined_call_operand.hbm [shape: bf16[128,256], index: 8, kind: input, shape index: {}]
  %s9 = inlined_call_operand.hbm [shape: f32[1,256], index: 9, kind: input, shape index: {}]
  %s10 = inlined_call_operand.hbm [shape: f32[8,256], index: 10, kind: output, shape index: {0}]
  %s11 = inlined_call_operand.hbm [shape: f32[1,1], index: 11, kind: output, shape index: {1}]
  %12 = xla_tuple %s10, %s11
  %s13 = sld [smem:[#allocation0]]
  $region98: #{tpu_custom_call.1} parent=0
    _
  %s15 = ssub.s32 1, %s13
  %s16 = scalar_select 0, %s15, %s13
  $region1: #{tpu_custom_call.1} parent=0
    #allocation2 [shape = 'u8[4096]{0}', space=vmem, size = 0x1000, scoped, tag = 'input window, operand 0, single buffered']
    #allocation3 [shape = 's32[1]{0}', space=sflag, size = 0x4, scoped, tag = 'scoped memory for tpu_custom_call.1']
    #allocation4 [shape = 's32[1]{0}', space=sflag, size = 0x4, scoped, tag = 'scoped memory for tpu_custom_call.1']
    #allocation5 [shape = 's32[1]{0}', space=sflag, size = 0x4, scoped, tag = 'scoped memory for tpu_custom_call.1']
    #allocation6 [shape = 'u8[4096]{0}', space=vmem, size = 0x1000, scoped, tag = 'input window, operand 1, single buffered']
    #allocation7 [shape = 's32[1]{0}', space=sflag, size = 0x4, scoped, tag = 'scoped memory for tpu_custom_call.1']
    #allocation8 [shape = 'u8[65536]{0}', space=vmem, size = 0x10000, scoped, tag = 'input window, operand 2, single buffered']
    #allocation9 [shape = 'u8[512]{0}', space=vmem, size = 0x400, scoped, tag = 'input window, operand 3, single buffered']
    #allocation10 [shape = 's32[1]{0}', space=sflag, size = 0x4, scoped, tag = 'scoped memory for tpu_custom_call.1']
    #allocation11 [shape = 'u8[65536]{0}', space=vmem, size = 0x10000, scoped, tag = 'input window, operand 4, single buffered']
    #allocation12 [shape = 'u8[1024]{0}', space=vmem, size = 0x400, scoped, tag = 'input window, operand 5, single buffered']
    #allocation13 [shape = 's32[1]{0}', space=sflag, size = 0x4, scoped, tag = 'scoped memory for tpu_custom_call.1']
    #allocation14 [shape = 'u8[32768]{0}', space=vmem, size = 0x8000, scoped, tag = 'input window, operand 6, single buffered']
    #allocation15 [shape = 'u8[512]{0}', space=vmem, size = 0x400, scoped, tag = 'input window, operand 7, single buffered']
    #allocation16 [shape = 's32[1]{0}', space=sflag, size = 0x4, scoped, tag = 'scoped memory for tpu_custom_call.1']
    #allocation17 [shape = 'u8[65536]{0}', space=vmem, size = 0x10000, scoped, tag = 'input window, operand 8, single buffered']
    #allocation18 [shape = 'u8[1024]{0}', space=vmem, size = 0x400, scoped, tag = 'input window, operand 9, single buffered']
    #allocation19 [shape = 's32[1]{0}', space=sflag, size = 0x4, scoped, tag = 'scoped memory for tpu_custom_call.1']
    #allocation20 [shape = 'u8[8192]{0}', space=vmem, size = 0x2000, scoped, tag = 'output window, operand 0, single buffered']
    #allocation21 [shape = 'u8[512]{0}', space=smem, size = 0x200, scoped, tag = 'output window, operand 1, single buffered']
    %17 = vsyncpa [#allocation3], 0
    %18 = vsyncpa [#allocation7], 0
    %19 = vsyncpa [#allocation10], 0
    %20 = vsyncpa [#allocation13], 0
    %21 = vsyncpa [#allocation16], 0
    %22 = vsyncpa [#allocation19], 0
    %23 = vsyncpa [#allocation4], 0
    %24 = vsyncpa [#allocation5], 0
    // Predicated region
    $region2: #{tpu_custom_call.1} parent=1 // pred_check
      _
    $region3: #{tpu_custom_call.1} parent=1 // pred_check_branch
      %26 = sbr.rel (0) target = $region5
    $region4: #{tpu_custom_call.1} parent=1 // pred_region
      %s28 = ssub.s32 128, 128
      %29 = vsyncadd [#allocation3], %s28
      %s31 = sshll.u32 [#allocation2], 4
      %s32 = int_to_ptr.vmem [resolvable:$true] %s31
      %34 = dma.hbm_to_vmem [thread:$0]  %s0, 128, %s32, [#allocation3]
    $region5: #{tpu_custom_call.1} parent=1 // pred_fallthru
      _
    // Predicated region
    $region6: #{tpu_custom_call.1} parent=1 // pred_check
      _
    $region7: #{tpu_custom_call.1} parent=1 // pred_check_branch
      %36 = sbr.rel (0) target = $region9
    $region8: #{tpu_custom_call.1} parent=1 // pred_region
      %s38 = ssub.s32 128, 128
      %39 = vsyncadd [#allocation7], %s38
      %s41 = sshll.u32 [#allocation6], 4
      %s42 = int_to_ptr.vmem [resolvable:$true] %s41
      %44 = dma.hbm_to_vmem [thread:$0]  %s1, 128, %s42, [#allocation7]
    $region9: #{tpu_custom_call.1} parent=1 // pred_fallthru
      _
    // Predicated region
    $region10: #{tpu_custom_call.1} parent=1 // pred_check
      _
    $region11: #{tpu_custom_call.1} parent=1 // pred_check_branch
      %46 = sbr.rel (0) target = $region13
    $region12: #{tpu_custom_call.1} parent=1 // pred_region
      %s48 = ssub.s32 2048, 2048
      %49 = vsyncadd [#allocation7], %s48
      %s50 = sshll.u32 [#allocation8], 4
      %s51 = int_to_ptr.vmem [resolvable:$true] %s50
      %56 = dma.hbm_to_vmem [thread:$0]  %s2, 2048, %s51, [#allocation7], 64, 64, 4
    $region13: #{tpu_custom_call.1} parent=1 // pred_fallthru
      _
    // Predicated region
    $region14: #{tpu_custom_call.1} parent=1 // pred_check
      _
    $region15: #{tpu_custom_call.1} parent=1 // pred_check_branch
      %58 = sbr.rel (0) target = $region17
    $region16: #{tpu_custom_call.1} parent=1 // pred_region
      %s60 = ssub.s32 16, 16
      %61 = vsyncadd [#allocation10], %s60
      %s63 = sshll.u32 [#allocation9], 4
      %s64 = int_to_ptr.vmem [resolvable:$true] %s63
      %66 = dma.hbm_to_vmem [thread:$0]  %s3, 16, %s64, [#allocation10]
    $region17: #{tpu_custom_call.1} parent=1 // pred_fallthru
      _
    // Predicated region
    $region18: #{tpu_custom_call.1} parent=1 // pred_check
      _
    $region19: #{tpu_custom_call.1} parent=1 // pred_check_branch
      %68 = sbr.rel (0) target = $region21
    $region20: #{tpu_custom_call.1} parent=1 // pred_region
      %s70 = ssub.s32 2048, 2048
      %71 = vsyncadd [#allocation10], %s70
      %s72 = sshll.u32 [#allocation11], 4
      %s73 = int_to_ptr.vmem [resolvable:$true] %s72
      %78 = dma.hbm_to_vmem [thread:$0]  %s4, 2048, %s73, [#allocation10], 128, 128, 8
    $region21: #{tpu_custom_call.1} parent=1 // pred_fallthru
      _
    // Predicated region
    $region22: #{tpu_custom_call.1} parent=1 // pred_check
      _
    $region23: #{tpu_custom_call.1} parent=1 // pred_check_branch
      %80 = sbr.rel (0) target = $region25
    $region24: #{tpu_custom_call.1} parent=1 // pred_region
      %s82 = ssub.s32 32, 32
      %83 = vsyncadd [#allocation13], %s82
      %s85 = sshll.u32 [#allocation12], 4
      %s86 = int_to_ptr.vmem [resolvable:$true] %s85
      %88 = dma.hbm_to_vmem [thread:$0]  %s5, 32, %s86, [#allocation13]
    $region25: #{tpu_custom_call.1} parent=1 // pred_fallthru
      _
    // Predicated region
    $region26: #{tpu_custom_call.1} parent=1 // pred_check
      _
    $region27: #{tpu_custom_call.1} parent=1 // pred_check_branch
      %90 = sbr.rel (0) target = $region29
    $region28: #{tpu_custom_call.1} parent=1 // pred_region
      %s92 = ssub.s32 1024, 1024
      %93 = vsyncadd [#allocation13], %s92
      %s94 = sshll.u32 [#allocation14], 4
      %s95 = int_to_ptr.vmem [resolvable:$true] %s94
      %100 = dma.hbm_to_vmem [thread:$0]  %s6, 1024, %s95, [#allocation13], 64, 64, 4
    $region29: #{tpu_custom_call.1} parent=1 // pred_fallthru
      _
    // Predicated region
    $region30: #{tpu_custom_call.1} parent=1 // pred_check
      _
    $region31: #{tpu_custom_call.1} parent=1 // pred_check_branch
      %102 = sbr.rel (0) target = $region33
    $region32: #{tpu_custom_call.1} parent=1 // pred_region
      %s104 = ssub.s32 16, 16
      %105 = vsyncadd [#allocation16], %s104
      %s107 = sshll.u32 [#allocation15], 4
      %s108 = int_to_ptr.vmem [resolvable:$true] %s107
      %110 = dma.hbm_to_vmem [thread:$0]  %s7, 16, %s108, [#allocation16]
    $region33: #{tpu_custom_call.1} parent=1 // pred_fallthru
      _
    // Predicated region
    $region34: #{tpu_custom_call.1} parent=1 // pred_check
      _
    $region35: #{tpu_custom_call.1} parent=1 // pred_check_branch
      %112 = sbr.rel (0) target = $region37
    $region36: #{tpu_custom_call.1} parent=1 // pred_region
      %s114 = ssub.s32 2048, 2048
      %115 = vsyncadd [#allocation16], %s114
      %s116 = sshll.u32 [#allocation17], 4
      %s117 = int_to_ptr.vmem [resolvable:$true] %s116
      %122 = dma.hbm_to_vmem [thread:$0]  %s8, 2048, %s117, [#allocation16], 128, 128, 8
    $region37: #{tpu_custom_call.1} parent=1 // pred_fallthru
      _
    // Predicated region
    $region38: #{tpu_custom_call.1} parent=1 // pred_check
      _
    $region39: #{tpu_custom_call.1} parent=1 // pred_check_branch
      %124 = sbr.rel (0) target = $region41
    $region40: #{tpu_custom_call.1} parent=1 // pred_region
      %s126 = ssub.s32 32, 32
      %127 = vsyncadd [#allocation19], %s126
      %s129 = sshll.u32 [#allocation18], 4
      %s130 = int_to_ptr.vmem [resolvable:$true] %s129
      %132 = dma.hbm_to_vmem [thread:$0]  %s9, 32, %s130, [#allocation19]
    $region41: #{tpu_custom_call.1} parent=1 // pred_fallthru
      _
    // Predicated region
    $region42: #{tpu_custom_call.1} parent=1 // pred_check
      _
    $region43: #{tpu_custom_call.1} parent=1 // pred_check_branch
      %134 = sbr.rel (0) target = $region45
    $region44: #{tpu_custom_call.1} parent=1 // pred_region
      %135 = dma.done [#allocation3], 128
    $region45: #{tpu_custom_call.1} parent=1 // pred_fallthru
      _
    // Predicated region
    $region46: #{tpu_custom_call.1} parent=1 // pred_check
      _
    $region47: #{tpu_custom_call.1} parent=1 // pred_check_branch
      %137 = sbr.rel (0) target = $region49
    $region48: #{tpu_custom_call.1} parent=1 // pred_region
      %138 = dma.done [#allocation7], 128
    $region49: #{tpu_custom_call.1} parent=1 // pred_fallthru
      _
    // Predicated region
    $region50: #{tpu_custom_call.1} parent=1 // pred_check
      _
    $region51: #{tpu_custom_call.1} parent=1 // pred_check_branch
      %140 = sbr.rel (0) target = $region53
    $region52: #{tpu_custom_call.1} parent=1 // pred_region
      %141 = dma.done [#allocation7], 2048
    $region53: #{tpu_custom_call.1} parent=1 // pred_fallthru
      _
    // Predicated region
    $region54: #{tpu_custom_call.1} parent=1 // pred_check
      _
    $region55: #{tpu_custom_call.1} parent=1 // pred_check_branch
      %143 = sbr.rel (0) target = $region57
    $region56: #{tpu_custom_call.1} parent=1 // pred_region
      %144 = dma.done [#allocation10], 16
    $region57: #{tpu_custom_call.1} parent=1 // pred_fallthru
      _
    // Predicated region
    $region58: #{tpu_custom_call.1} parent=1 // pred_check
      _
    $region59: #{tpu_custom_call.1} parent=1 // pred_check_branch
      %146 = sbr.rel (0) target = $region61
    $region60: #{tpu_custom_call.1} parent=1 // pred_region
      %147 = dma.done [#allocation10], 2048
    $region61: #{tpu_custom_call.1} parent=1 // pred_fallthru
      _
    // Predicated region
    $region62: #{tpu_custom_call.1} parent=1 // pred_check
      _
    $region63: #{tpu_custom_call.1} parent=1 // pred_check_branch
      %149 = sbr.rel (0) target = $region65
    $region64: #{tpu_custom_call.1} parent=1 // pred_region
      %150 = dma.done [#allocation13], 32
    $region65: #{tpu_custom_call.1} parent=1 // pred_fallthru
      _
    // Predicated region
    $region66: #{tpu_custom_call.1} parent=1 // pred_check
      _
    $region67: #{tpu_custom_call.1} parent=1 // pred_check_branch
      %152 = sbr.rel (0) target = $region69
    $region68: #{tpu_custom_call.1} parent=1 // pred_region
      %153 = dma.done [#allocation13], 1024
    $region69: #{tpu_custom_call.1} parent=1 // pred_fallthru
      _
    // Predicated region
    $region70: #{tpu_custom_call.1} parent=1 // pred_check
      _
    $region71: #{tpu_custom_call.1} parent=1 // pred_check_branch
      %155 = sbr.rel (0) target = $region73
    $region72: #{tpu_custom_call.1} parent=1 // pred_region
      %156 = dma.done [#allocation16], 16
    $region73: #{tpu_custom_call.1} parent=1 // pred_fallthru
      _
    // Predicated region
    $region74: #{tpu_custom_call.1} parent=1 // pred_check
      _
    $region75: #{tpu_custom_call.1} parent=1 // pred_check_branch
      %158 = sbr.rel (0) target = $region77
    $region76: #{tpu_custom_call.1} parent=1 // pred_region
      %159 = dma.done [#allocation16], 2048
    $region77: #{tpu_custom_call.1} parent=1 // pred_fallthru
      _
    // Predicated region
    $region78: #{tpu_custom_call.1} parent=1 // pred_check
      _
    $region79: #{tpu_custom_call.1} parent=1 // pred_check_branch
      %161 = sbr.rel (0) target = $region81
    $region80: #{tpu_custom_call.1} parent=1 // pred_region
      %162 = dma.done [#allocation19], 32
    $region81: #{tpu_custom_call.1} parent=1 // pred_fallthru
      _
    %v165 = vld [vmem:[#allocation2] sm:$0xff]
    %v166 = vld [vmem:[#allocation8] sm:$0xf]
    %v167 = vld [vmem:[#allocation8 + $0x4] sm:$0xf]
    %v168 = vld [vmem:[#allocation8 + $0x8] sm:$0xf]
    %v169 = vld [vmem:[#allocation8 + $0xc] sm:$0xf]
    %v170 = vld [vmem:[#allocation8 + $0x10] sm:$0xf]
    %v171 = vld [vmem:[#allocation8 + $0x14] sm:$0xf]
    %v172 = vld [vmem:[#allocation8 + $0x18] sm:$0xf]
    %v173 = vld [vmem:[#allocation8 + $0x1c] sm:$0xf]
    %v174 = vld [vmem:[#allocation8 + $0x20] sm:$0xf]
    %v175 = vld [vmem:[#allocation8 + $0x24] sm:$0xf]
    %v176 = vld [vmem:[#allocation8 + $0x28] sm:$0xf]
    %v177 = vld [vmem:[#allocation8 + $0x2c] sm:$0xf]
    %v178 = vld [vmem:[#allocation8 + $0x30] sm:$0xf]
    %v179 = vld [vmem:[#allocation8 + $0x34] sm:$0xf]
    %v180 = vld [vmem:[#allocation8 + $0x38] sm:$0xf]
    %v181 = vld [vmem:[#allocation8 + $0x3c] sm:$0xf]
    %v182 = vld [vmem:[#allocation8 + $0x40] sm:$0xf]
    %v183 = vld [vmem:[#allocation8 + $0x44] sm:$0xf]
    %v184 = vld [vmem:[#allocation8 + $0x48] sm:$0xf]
    %v185 = vld [vmem:[#allocation8 + $0x4c] sm:$0xf]
    %v186 = vld [vmem:[#allocation8 + $0x50] sm:$0xf]
    %v187 = vld [vmem:[#allocation8 + $0x54] sm:$0xf]
    %v188 = vld [vmem:[#allocation8 + $0x58] sm:$0xf]
    %v189 = vld [vmem:[#allocation8 + $0x5c] sm:$0xf]
    %v190 = vld [vmem:[#allocation8 + $0x60] sm:$0xf]
    %v191 = vld [vmem:[#allocation8 + $0x64] sm:$0xf]
    %v192 = vld [vmem:[#allocation8 + $0x68] sm:$0xf]
    %v193 = vld [vmem:[#allocation8 + $0x6c] sm:$0xf]
    %v194 = vld [vmem:[#allocation8 + $0x70] sm:$0xf]
    %v195 = vld [vmem:[#allocation8 + $0x74] sm:$0xf]
    %v196 = vld [vmem:[#allocation8 + $0x78] sm:$0xf]
    %v197 = vld [vmem:[#allocation8 + $0x7c] sm:$0xf]
    %v198 = vld [vmem:[#allocation9] sm:$0x1]
    %v200 = vlaneseq
    %v201 = vshrl.u32 %v200, 7
    %v202 = vsub.s32 0, %v201
    %v203 = vrot.slane %v198, %v202
    %v206 = vunpack.c.l.b16 %v165
    %v207 = vunpack.c.h.b16 %v165
    %v208 = vpack.c.b16 %v206, %v206
    %v209 = vpack.c.b16 %v207, %v207
    %v244 = vunpack.c.l.b16 %v166
    %v245 = vunpack.c.l.b16 %v167
    %v246 = vunpack.c.l.b16 %v168
    %v247 = vunpack.c.l.b16 %v169
    %v248 = vunpack.c.l.b16 %v170
    %v249 = vunpack.c.l.b16 %v171
    %v250 = vunpack.c.l.b16 %v172
    %v251 = vunpack.c.l.b16 %v173
    %v252 = vunpack.c.l.b16 %v174
    %v253 = vunpack.c.l.b16 %v175
    %v254 = vunpack.c.l.b16 %v176
    %v255 = vunpack.c.l.b16 %v177
    %v256 = vunpack.c.l.b16 %v178
    %v257 = vunpack.c.l.b16 %v179
    %v258 = vunpack.c.l.b16 %v180
    %v259 = vunpack.c.l.b16 %v181
    %v260 = vunpack.c.l.b16 %v182
    %v261 = vunpack.c.l.b16 %v183
    %v262 = vunpack.c.l.b16 %v184
    %v263 = vunpack.c.l.b16 %v185
    %v264 = vunpack.c.l.b16 %v186
    %v265 = vunpack.c.l.b16 %v187
    %v266 = vunpack.c.l.b16 %v188
    %v267 = vunpack.c.l.b16 %v189
    %v268 = vunpack.c.l.b16 %v190
    %v269 = vunpack.c.l.b16 %v191
    %v270 = vunpack.c.l.b16 %v192
    %v271 = vunpack.c.l.b16 %v193
    %v272 = vunpack.c.l.b16 %v194
    %v273 = vunpack.c.l.b16 %v195
    %v274 = vunpack.c.l.b16 %v196
    %v275 = vunpack.c.l.b16 %v197
    %v276 = vpack.c.b16 %v245, %v244
    %v277 = vpack.c.b16 %v247, %v246
    %v278 = vpack.c.b16 %v249, %v248
    %v279 = vpack.c.b16 %v251, %v250
    %v280 = vpack.c.b16 %v253, %v252
    %v281 = vpack.c.b16 %v255, %v254
    %v282 = vpack.c.b16 %v257, %v256
    %v283 = vpack.c.b16 %v259, %v258
    %v284 = vpack.c.b16 %v261, %v260
    %v285 = vpack.c.b16 %v263, %v262
    %v286 = vpack.c.b16 %v265, %v264
    %v287 = vpack.c.b16 %v267, %v266
    %v288 = vpack.c.b16 %v269, %v268
    %v289 = vpack.c.b16 %v271, %v270
    %v290 = vpack.c.b16 %v273, %v272
    %v291 = vpack.c.b16 %v275, %v274
    %308 = vmatprep.subr.bf16.mxu0 0
    %309 = vmatpush1.bf16.msra.mxu0 %v276
    %310 = vmatprep.subr.bf16.mxu0 0
    %311 = vmatpush1.bf16.msra.mxu0 %v277
    %312 = vmatprep.subr.bf16.mxu0 0
    %313 = vmatpush1.bf16.msra.mxu0 %v278
    %314 = vmatprep.subr.bf16.mxu0 0
    %315 = vmatpush1.bf16.msra.mxu0 %v279
    %316 = vmatprep.subr.bf16.mxu0 0
    %317 = vmatpush1.bf16.msra.mxu0 %v280
    %318 = vmatprep.subr.bf16.mxu0 0
    %319 = vmatpush1.bf16.msra.mxu0 %v281
    %320 = vmatprep.subr.bf16.mxu0 0
    %321 = vmatpush1.bf16.msra.mxu0 %v282
    %322 = vmatprep.subr.bf16.mxu0 0
    %323 = vmatpush1.bf16.msra.mxu0 %v283
    %324 = vmatprep.subr.bf16.mxu0 0
    %325 = vmatpush1.bf16.msra.mxu0 %v284
    %326 = vmatprep.subr.bf16.mxu0 0
    %327 = vmatpush1.bf16.msra.mxu0 %v285
    %328 = vmatprep.subr.bf16.mxu0 0
    %329 = vmatpush1.bf16.msra.mxu0 %v286
    %330 = vmatprep.subr.bf16.mxu0 0
    %331 = vmatpush1.bf16.msra.mxu0 %v287
    %332 = vmatprep.subr.bf16.mxu0 0
    %333 = vmatpush1.bf16.msra.mxu0 %v288
    %334 = vmatprep.subr.bf16.mxu0 0
    %335 = vmatpush1.bf16.msra.mxu0 %v289
    %336 = vmatprep.subr.bf16.mxu0 0
    %337 = vmatpush1.bf16.msra.mxu0 %v290
    %338 = vmatprep.subr.bf16.mxu0 0
    %339 = vmatpush1.bf16.msra.mxu0 %v291
    %340 = vmatprep.mubr.bf16.mxu0 %v209
    %341 = vmatmul.mubr.bf16.gmra.mrb[0].mxu0 %v208
    %v342 = vpop.f32.mrb[0].mxu0
    %v343 = vadd.f32 %v203, %v342
    %v344 = vpop.f32.mrb[0].mxu0
    %v345 = vpop.f32.mrb[0].mxu0
    %v346 = vpop.f32.mrb[0].mxu0
    %347 = vdwg.mxu0
    %v348 = vmax.f32 %v343, 0.0
    %v349 = vpack.c.bf16 %v348, %v348
    %v350 = vld [vmem:[#allocation11] sm:$0xff]
    %v351 = vld [vmem:[#allocation11 + $0x8] sm:$0xff]
    %v352 = vld [vmem:[#allocation11 + $0x10] sm:$0xff]
    %v353 = vld [vmem:[#allocation11 + $0x18] sm:$0xff]
    %v354 = vld [vmem:[#allocation11 + $0x20] sm:$0xff]
    %v355 = vld [vmem:[#allocation11 + $0x28] sm:$0xff]
    %v356 = vld [vmem:[#allocation11 + $0x30] sm:$0xff]
    %v357 = vld [vmem:[#allocation11 + $0x38] sm:$0xff]
    %v358 = vld [vmem:[#allocation11 + $0x40] sm:$0xff]
    %v359 = vld [vmem:[#allocation11 + $0x48] sm:$0xff]
    %v360 = vld [vmem:[#allocation11 + $0x50] sm:$0xff]
    %v361 = vld [vmem:[#allocation11 + $0x58] sm:$0xff]
    %v362 = vld [vmem:[#allocation11 + $0x60] sm:$0xff]
    %v363 = vld [vmem:[#allocation11 + $0x68] sm:$0xff]
    %v364 = vld [vmem:[#allocation11 + $0x70] sm:$0xff]
    %v365 = vld [vmem:[#allocation11 + $0x78] sm:$0xff]
    %v366 = vld [vmem:[#allocation12] sm:$0x3]
    %v368 = vlaneseq
    %v369 = vshrl.u32 %v368, 7
    %v370 = vsub.s32 0, %v369
    %v371 = vrot.slane %v366, %v370
    %v372 = vlaneseq
    %v373 = vshrl.u32 %v372, 7
    %v374 = vsub.s32 1, %v373
    %v375 = vrot.slane %v366, %v374
    %v394 = vunpack.c.l.b16 %v350
    %v395 = vunpack.c.h.b16 %v350
    %v396 = vunpack.c.l.b16 %v351
    %v397 = vunpack.c.h.b16 %v351
    %v398 = vunpack.c.l.b16 %v352
    %v399 = vunpack.c.h.b16 %v352
    %v400 = vunpack.c.l.b16 %v353
    %v401 = vunpack.c.h.b16 %v353
    %v402 = vunpack.c.l.b16 %v354
    %v403 = vunpack.c.h.b16 %v354
    %v404 = vunpack.c.l.b16 %v355
    %v405 = vunpack.c.h.b16 %v355
    %v406 = vunpack.c.l.b16 %v356
    %v407 = vunpack.c.h.b16 %v356
    %v408 = vunpack.c.l.b16 %v357
    %v409 = vunpack.c.h.b16 %v357
    %v410 = vunpack.c.l.b16 %v358
    %v411 = vunpack.c.h.b16 %v358
    %v412 = vunpack.c.l.b16 %v359
    %v413 = vunpack.c.h.b16 %v359
    %v414 = vunpack.c.l.b16 %v360
    %v415 = vunpack.c.h.b16 %v360
    %v416 = vunpack.c.l.b16 %v361
    %v417 = vunpack.c.h.b16 %v361
    %v418 = vunpack.c.l.b16 %v362
    %v419 = vunpack.c.h.b16 %v362
    %v420 = vunpack.c.l.b16 %v363
    %v421 = vunpack.c.h.b16 %v363
    %v422 = vunpack.c.l.b16 %v364
    %v423 = vunpack.c.h.b16 %v364
    %v424 = vunpack.c.l.b16 %v365
    %v425 = vunpack.c.h.b16 %v365
    %v426 = vpack.c.b16 %v396, %v394
    %v427 = vpack.c.b16 %v397, %v395
    %v428 = vpack.c.b16 %v400, %v398
    %v429 = vpack.c.b16 %v401, %v399
    %v430 = vpack.c.b16 %v404, %v402
    %v431 = vpack.c.b16 %v405, %v403
    %v432 = vpack.c.b16 %v408, %v406
    %v433 = vpack.c.b16 %v409, %v407
    %v434 = vpack.c.b16 %v412, %v410
    %v435 = vpack.c.b16 %v413, %v411
    %v436 = vpack.c.b16 %v416, %v414
    %v437 = vpack.c.b16 %v417, %v415
    %v438 = vpack.c.b16 %v420, %v418
    %v439 = vpack.c.b16 %v421, %v419
    %v440 = vpack.c.b16 %v424, %v422
    %v441 = vpack.c.b16 %v425, %v423
    %458 = vmatprep.subr.bf16.mxu0 %v427
    %459 = vmatpush1.bf16.msra.mxu0 %v426
    %460 = vmatprep.subr.bf16.mxu0 %v429
    %461 = vmatpush1.bf16.msra.mxu0 %v428
    %462 = vmatprep.subr.bf16.mxu0 %v431
    %463 = vmatpush1.bf16.msra.mxu0 %v430
    %464 = vmatprep.subr.bf16.mxu0 %v433
    %465 = vmatpush1.bf16.msra.mxu0 %v432
    %466 = vmatprep.subr.bf16.mxu0 %v435
    %467 = vmatpush1.bf16.msra.mxu0 %v434
    %468 = vmatprep.subr.bf16.mxu0 %v437
    %469 = vmatpush1.bf16.msra.mxu0 %v436
    %470 = vmatprep.subr.bf16.mxu0 %v439
    %471 = vmatpush1.bf16.msra.mxu0 %v438
    %472 = vmatprep.subr.bf16.mxu0 %v441
    %473 = vmatpush1.bf16.msra.mxu0 %v440
    %474 = vmatprep.subr.bf16.mxu0 0
    %475 = vmatpush1.bf16.msra.mxu0 0
    %476 = vmatprep.subr.bf16.mxu0 0
    %477 = vmatpush1.bf16.msra.mxu0 0
    %478 = vmatprep.subr.bf16.mxu0 0
    %479 = vmatpush1.bf16.msra.mxu0 0
    %480 = vmatprep.subr.bf16.mxu0 0
    %481 = vmatpush1.bf16.msra.mxu0 0
    %482 = vmatprep.subr.bf16.mxu0 0
    %483 = vmatpush1.bf16.msra.mxu0 0
    %484 = vmatprep.subr.bf16.mxu0 0
    %485 = vmatpush1.bf16.msra.mxu0 0
    %486 = vmatprep.subr.bf16.mxu0 0
    %487 = vmatpush1.bf16.msra.mxu0 0
    %488 = vmatprep.subr.bf16.mxu0 0
    %489 = vmatpush1.bf16.msra.mxu0 0
    %490 = vmatprep.mubr.bf16.mxu0 0
    %491 = vmatmul.mubr.bf16.gmra.mrb[0].mxu0 %v349
    %v492 = vpop.f32.mrb[0].mxu0
    %v493 = vadd.f32 %v371, %v492
    %v494 = vpop.f32.mrb[0].mxu0
    %v495 = vadd.f32 %v375, %v494
    %v496 = vpop.f32.mrb[0].mxu0
    %v497 = vpop.f32.mrb[0].mxu0
    %498 = vdwg.mxu0
    %v499 = vmul.f32 %v495, 1.442695
    %v500 = vpow.pop %v499
    %v501 = vld [vmem:[#allocation6] sm:$0xff]
    %v502 = vmul.f32 %v500, %v501
    %v503 = vadd.f32 %v493, %v502
    %v504 = vmul.f32 %v500, %v500
    %v505 = vmul.f32 %v493, %v493
    %v506 = vadd.f32 %v504, %v505
    %v507 = vsub.f32 %v506, %v495
    %v508 = vsub.f32 %v507, 0.5
    %s509 = smul.u32 0, 8
    %s510 = ssub.s32 2, %s509
    %v511 = vlaneseq
    %v512 = vshrl.u32 %v511, 7
    %v513 = vstv %s510
    %vm514 = vcmp.lt.s32.totalorder %v512, %v513
    %v515 = vsel %vm514, %v508, 0.0
    %516 = vadd.xlane.f32.xlu0 %v515
    %v517 = vpop.xlane.xlu0 %516
    %v518 = vrot.slane %v517, 4
    %v519 = vadd.f32 %v517, %v518
    %v520 = vrot.slane %v519, 2
    %v521 = vadd.f32 %v519, %v520
    %v522 = vrot.slane %v521, 1
    %v523 = vadd.f32 %v521, %v522
    %s524 = vtos %v523
    %s525 = scalar_lea.smem [#allocation21], 0
    %526 = sst [smem:[%s525]] %s524
    %v527 = vpack.c.bf16 %v503, %v503
    %v528 = vld [vmem:[#allocation14] sm:$0xf]
    %v529 = vld [vmem:[#allocation14 + $0x4] sm:$0xf]
    %v530 = vld [vmem:[#allocation14 + $0x8] sm:$0xf]
    %v531 = vld [vmem:[#allocation14 + $0xc] sm:$0xf]
    %v532 = vld [vmem:[#allocation14 + $0x10] sm:$0xf]
    %v533 = vld [vmem:[#allocation14 + $0x14] sm:$0xf]
    %v534 = vld [vmem:[#allocation14 + $0x18] sm:$0xf]
    %v535 = vld [vmem:[#allocation14 + $0x1c] sm:$0xf]
    %v536 = vld [vmem:[#allocation14 + $0x20] sm:$0xf]
    %v537 = vld [vmem:[#allocation14 + $0x24] sm:$0xf]
    %v538 = vld [vmem:[#allocation14 + $0x28] sm:$0xf]
    %v539 = vld [vmem:[#allocation14 + $0x2c] sm:$0xf]
    %v540 = vld [vmem:[#allocation14 + $0x30] sm:$0xf]
    %v541 = vld [vmem:[#allocation14 + $0x34] sm:$0xf]
    %v542 = vld [vmem:[#allocation14 + $0x38] sm:$0xf]
    %v543 = vld [vmem:[#allocation14 + $0x3c] sm:$0xf]
    %v544 = vld [vmem:[#allocation15] sm:$0x1]
    %v546 = vlaneseq
    %v547 = vshrl.u32 %v546, 7
    %v548 = vsub.s32 0, %v547
    %v549 = vrot.slane %v544, %v548
    %v567 = vunpack.c.l.b16 %v528
    %v568 = vunpack.c.l.b16 %v529
    %v569 = vunpack.c.l.b16 %v530
    %v570 = vunpack.c.l.b16 %v531
    %v571 = vunpack.c.l.b16 %v532
    %v572 = vunpack.c.l.b16 %v533
    %v573 = vunpack.c.l.b16 %v534
    %v574 = vunpack.c.l.b16 %v535
    %v575 = vunpack.c.l.b16 %v536
    %v576 = vunpack.c.l.b16 %v537
    %v577 = vunpack.c.l.b16 %v538
    %v578 = vunpack.c.l.b16 %v539
    %v579 = vunpack.c.l.b16 %v540
    %v580 = vunpack.c.l.b16 %v541
    %v581 = vunpack.c.l.b16 %v542
    %v582 = vunpack.c.l.b16 %v543
    %v583 = vpack.c.b16 %v568, %v567
    %v584 = vpack.c.b16 %v570, %v569
    %v585 = vpack.c.b16 %v572, %v571
    %v586 = vpack.c.b16 %v574, %v573
    %v587 = vpack.c.b16 %v576, %v575
    %v588 = vpack.c.b16 %v578, %v577
    %v589 = vpack.c.b16 %v580, %v579
    %v590 = vpack.c.b16 %v582, %v581
    %599 = vmatprep.subr.bf16.mxu0 0
    %600 = vmatpush1.bf16.msra.mxu0 %v583
    %601 = vmatprep.subr.bf16.mxu0 0
    %602 = vmatpush1.bf16.msra.mxu0 %v584
    %603 = vmatprep.subr.bf16.mxu0 0
    %604 = vmatpush1.bf16.msra.mxu0 %v585
    %605 = vmatprep.subr.bf16.mxu0 0
    %606 = vmatpush1.bf16.msra.mxu0 %v586
    %607 = vmatprep.subr.bf16.mxu0 0
    %608 = vmatpush1.bf16.msra.mxu0 %v587
    %609 = vmatprep.subr.bf16.mxu0 0
    %610 = vmatpush1.bf16.msra.mxu0 %v588
    %611 = vmatprep.subr.bf16.mxu0 0
    %612 = vmatpush1.bf16.msra.mxu0 %v589
    %613 = vmatprep.subr.bf16.mxu0 0
    %614 = vmatpush1.bf16.msra.mxu0 %v590
    %615 = vmatprep.subr.bf16.mxu0 0
    %616 = vmatpush1.bf16.msra.mxu0 0
    %617 = vmatprep.subr.bf16.mxu0 0
    %618 = vmatpush1.bf16.msra.mxu0 0
    %619 = vmatprep.subr.bf16.mxu0 0
    %620 = vmatpush1.bf16.msra.mxu0 0
    %621 = vmatprep.subr.bf16.mxu0 0
    %622 = vmatpush1.bf16.msra.mxu0 0
    %623 = vmatprep.subr.bf16.mxu0 0
    %624 = vmatpush1.bf16.msra.mxu0 0
    %625 = vmatprep.subr.bf16.mxu0 0
    %626 = vmatpush1.bf16.msra.mxu0 0
    %627 = vmatprep.subr.bf16.mxu0 0
    %628 = vmatpush1.bf16.msra.mxu0 0
    %629 = vmatprep.subr.bf16.mxu0 0
    %630 = vmatpush1.bf16.msra.mxu0 0
    %631 = vmatprep.mubr.bf16.mxu0 0
    %632 = vmatmul.mubr.bf16.gmra.mrb[0].mxu0 %v527
    %v633 = vpop.f32.mrb[0].mxu0
    %v634 = vadd.f32 %v549, %v633
    %v635 = vpop.f32.mrb[0].mxu0
    %v636 = vpop.f32.mrb[0].mxu0
    %v637 = vpop.f32.mrb[0].mxu0
    %638 = vdwg.mxu0
    %v639 = vmax.f32 %v634, 0.0
    %v640 = vpack.c.bf16 %v639, %v639
    %v641 = vld [vmem:[#allocation17] sm:$0xff]
    %v642 = vld [vmem:[#allocation17 + $0x8] sm:$0xff]
    %v643 = vld [vmem:[#allocation17 + $0x10] sm:$0xff]
    %v644 = vld [vmem:[#allocation17 + $0x18] sm:$0xff]
    %v645 = vld [vmem:[#allocation17 + $0x20] sm:$0xff]
    %v646 = vld [vmem:[#allocation17 + $0x28] sm:$0xff]
    %v647 = vld [vmem:[#allocation17 + $0x30] sm:$0xff]
    %v648 = vld [vmem:[#allocation17 + $0x38] sm:$0xff]
    %v649 = vld [vmem:[#allocation17 + $0x40] sm:$0xff]
    %v650 = vld [vmem:[#allocation17 + $0x48] sm:$0xff]
    %v651 = vld [vmem:[#allocation17 + $0x50] sm:$0xff]
    %v652 = vld [vmem:[#allocation17 + $0x58] sm:$0xff]
    %v653 = vld [vmem:[#allocation17 + $0x60] sm:$0xff]
    %v654 = vld [vmem:[#allocation17 + $0x68] sm:$0xff]
    %v655 = vld [vmem:[#allocation17 + $0x70] sm:$0xff]
    %v656 = vld [vmem:[#allocation17 + $0x78] sm:$0xff]
    %v657 = vld [vmem:[#allocation18] sm:$0x3]
    %v659 = vlaneseq
    %v660 = vshrl.u32 %v659, 7
    %v661 = vsub.s32 0, %v660
    %v662 = vrot.slane %v657, %v661
    %v663 = vlaneseq
    %v664 = vshrl.u32 %v663, 7
    %v665 = vsub.s32 1, %v664
    %v666 = vrot.slane %v657, %v665
    %v685 = vunpack.c.l.b16 %v641
    %v686 = vunpack.c.h.b16 %v641
    %v687 = vunpack.c.l.b16 %v642
    %v688 = vunpack.c.h.b16 %v642
    %v689 = vunpack.c.l.b16 %v643
    %v690 = vunpack.c.h.b16 %v643
    %v691 = vunpack.c.l.b16 %v644
    %v692 = vunpack.c.h.b16 %v644
    %v693 = vunpack.c.l.b16 %v645
    %v694 = vunpack.c.h.b16 %v645
    %v695 = vunpack.c.l.b16 %v646
    %v696 = vunpack.c.h.b16 %v646
    %v697 = vunpack.c.l.b16 %v647
    %v698 = vunpack.c.h.b16 %v647
    %v699 = vunpack.c.l.b16 %v648
    %v700 = vunpack.c.h.b16 %v648
    %v701 = vunpack.c.l.b16 %v649
    %v702 = vunpack.c.h.b16 %v649
    %v703 = vunpack.c.l.b16 %v650
    %v704 = vunpack.c.h.b16 %v650
    %v705 = vunpack.c.l.b16 %v651
    %v706 = vunpack.c.h.b16 %v651
    %v707 = vunpack.c.l.b16 %v652
    %v708 = vunpack.c.h.b16 %v652
    %v709 = vunpack.c.l.b16 %v653
    %v710 = vunpack.c.h.b16 %v653
    %v711 = vunpack.c.l.b16 %v654
    %v712 = vunpack.c.h.b16 %v654
    %v713 = vunpack.c.l.b16 %v655
    %v714 = vunpack.c.h.b16 %v655
    %v715 = vunpack.c.l.b16 %v656
    %v716 = vunpack.c.h.b16 %v656
    %v717 = vpack.c.b16 %v687, %v685
    %v718 = vpack.c.b16 %v688, %v686
    %v719 = vpack.c.b16 %v691, %v689
    %v720 = vpack.c.b16 %v692, %v690
    %v721 = vpack.c.b16 %v695, %v693
    %v722 = vpack.c.b16 %v696, %v694
    %v723 = vpack.c.b16 %v699, %v697
    %v724 = vpack.c.b16 %v700, %v698
    %v725 = vpack.c.b16 %v703, %v701
    %v726 = vpack.c.b16 %v704, %v702
    %v727 = vpack.c.b16 %v707, %v705
    %v728 = vpack.c.b16 %v708, %v706
    %v729 = vpack.c.b16 %v711, %v709
    %v730 = vpack.c.b16 %v712, %v710
    %v731 = vpack.c.b16 %v715, %v713
    %v732 = vpack.c.b16 %v716, %v714
    %749 = vmatprep.subr.bf16.mxu0 %v718
    %750 = vmatpush1.bf16.msra.mxu0 %v717
    %751 = vmatprep.subr.bf16.mxu0 %v720
    %752 = vmatpush1.bf16.msra.mxu0 %v719
    %753 = vmatprep.subr.bf16.mxu0 %v722
    %754 = vmatpush1.bf16.msra.mxu0 %v721
    %755 = vmatprep.subr.bf16.mxu0 %v724
    %756 = vmatpush1.bf16.msra.mxu0 %v723
    %757 = vmatprep.subr.bf16.mxu0 %v726
    %758 = vmatpush1.bf16.msra.mxu0 %v725
    %759 = vmatprep.subr.bf16.mxu0 %v728
    %760 = vmatpush1.bf16.msra.mxu0 %v727
    %761 = vmatprep.subr.bf16.mxu0 %v730
    %762 = vmatpush1.bf16.msra.mxu0 %v729
    %763 = vmatprep.subr.bf16.mxu0 %v732
    %764 = vmatpush1.bf16.msra.mxu0 %v731
    %765 = vmatprep.subr.bf16.mxu0 0
    %766 = vmatpush1.bf16.msra.mxu0 0
    %767 = vmatprep.subr.bf16.mxu0 0
    %768 = vmatpush1.bf16.msra.mxu0 0
    %769 = vmatprep.subr.bf16.mxu0 0
    %770 = vmatpush1.bf16.msra.mxu0 0
    %771 = vmatprep.subr.bf16.mxu0 0
    %772 = vmatpush1.bf16.msra.mxu0 0
    %773 = vmatprep.subr.bf16.mxu0 0
    %774 = vmatpush1.bf16.msra.mxu0 0
    %775 = vmatprep.subr.bf16.mxu0 0
    %776 = vmatpush1.bf16.msra.mxu0 0
    %777 = vmatprep.subr.bf16.mxu0 0
    %778 = vmatpush1.bf16.msra.mxu0 0
    %779 = vmatprep.subr.bf16.mxu0 0
    %780 = vmatpush1.bf16.msra.mxu0 0
    %781 = vmatprep.mubr.bf16.mxu0 0
    %782 = vmatmul.mubr.bf16.gmra.mrb[0].mxu0 %v640
    %v783 = vpop.f32.mrb[0].mxu0
    %v784 = vadd.f32 %v662, %v783
    %v785 = vpop.f32.mrb[0].mxu0
    %v786 = vadd.f32 %v666, %v785
    %v787 = vpop.f32.mrb[0].mxu0
    %v788 = vpop.f32.mrb[0].mxu0
    %789 = vdwg.mxu0
    %v790 = vpack.c.bf16 %v784, %v784
    %v791 = vpack.c.bf16 %v786, %v786
    %v792 = vxor.u32 %v790, 2147516416
    %v793 = vxor.u32 %v791, 2147516416
    %v795 = vmul.bf16 %v792, 1069105081
    %v796 = vpow.bf16.pop %v795
    %v798 = vmul.bf16 %v793, 1069105081
    %v799 = vpow.bf16.pop %v798
    %v800 = vadd.bf16 %v796, 1065369472
    %v801 = vadd.bf16 %v799, 1065369472
    %v802 = vrcp.bf16.pop %v800
    %v803 = vmul.bf16 1065369472, %v802
    %v804 = vrcp.bf16.pop %v801
    %v805 = vmul.bf16 1065369472, %v804
    %v806 = vunpack.c.l.bf16 %v803
    %v807 = vunpack.c.l.bf16 %v805
    %808 = vst [vmem:[#allocation20] sm:$0xff] %v806
    %809 = vst [vmem:[#allocation20 + $0x8] sm:$0xff] %v807
    // Predicated region
    $region82: #{tpu_custom_call.1} parent=1 // pred_check
      _
    $region83: #{tpu_custom_call.1} parent=1 // pred_check_branch
      %811 = sbr.rel (0) target = $region85
    $region84: #{tpu_custom_call.1} parent=1 // pred_region
      %s813 = ssub.s32 256, 256
      %814 = vsyncadd [#allocation4], %s813
      %s816 = sshll.u32 [#allocation20], 4
      %s817 = int_to_ptr.vmem [resolvable:$true] %s816
      %819 = dma.vmem_to_hbm [thread:$0]  %s817, 256, %s10, [#allocation4]
    $region85: #{tpu_custom_call.1} parent=1 // pred_fallthru
      _
    // Predicated region
    $region86: #{tpu_custom_call.1} parent=1 // pred_check
      _
    $region87: #{tpu_custom_call.1} parent=1 // pred_check_branch
      %821 = sbr.rel (0) target = $region89
    $region88: #{tpu_custom_call.1} parent=1 // pred_region
      %s823 = ssub.s32 16, 16
      %824 = vsyncadd [#allocation5], %s823
      %827 = dma.smem_to_hbm [#allocation21], 16, %s11, [#allocation5]
    $region89: #{tpu_custom_call.1} parent=1 // pred_fallthru
      _
    // Predicated region
    $region90: #{tpu_custom_call.1} parent=1 // pred_check
      _
    $region91: #{tpu_custom_call.1} parent=1 // pred_check_branch
      %829 = sbr.rel (0) target = $region93
    $region92: #{tpu_custom_call.1} parent=1 // pred_region
      %830 = dma.done [#allocation4], 256
    $region93: #{tpu_custom_call.1} parent=1 // pred_fallthru
      _
    // Predicated region
    $region94: #{tpu_custom_call.1} parent=1 // pred_check
      _
    $region95: #{tpu_custom_call.1} parent=1 // pred_check_branch
      %832 = sbr.rel (0) target = $region97
    $region96: #{tpu_custom_call.1} parent=1 // pred_region
      %833 = dma.done [#allocation5], 16
    $region97: #{tpu_custom_call.1} parent=1 // pred_fallthru
      _
    %834 = sfence
    %835 = vsyncpa [#allocation3], 1
    %836 = vsyncpa [#allocation7], 1
    %837 = vsyncpa [#allocation10], 1
    %838 = vsyncpa [#allocation13], 1
    %839 = vsyncpa [#allocation16], 1
    %840 = vsyncpa [#allocation19], 1
    %841 = vsyncpa [#allocation4], 1
    %842 = vsyncpa [#allocation5], 1

</llo_original>
